<compile_context>
chip_gen: v7x
topology: tpu7x:2x2x1
jax: 0.10.0
libtpu: 0.0.40
codegen_flags: <defaults>
</compile_context>

<pallas_src>
import functools

import numpy as np

import jax
import jax.numpy as jnp
from jax.experimental import pallas as pl
from jax.experimental.pallas import tpu as pltpu


def _d2s_kernel(gmat_ref, x_ref, o_ref, *, bs: int, cc: int, th: int, w: int,
                compute_dtype):
    # gmat_ref: (bs, w, bs*w)        resident 0/1 column-scatter, one per b2
    # x_ref:    (1, bs*bs, cc, th, w)  input block (groups x chan-chunk x rows)
    # o_ref:    (1, cc, th, bs*bs*w)   output block (lane-dense flattened rows)
    chunk = bs * w
    for b1 in range(bs):
        # Column interleave for row-phase b1: sum of bs lane-disjoint 0/1
        # scatters (bs fresh dot results, no persistent accumulator).
        acc = None
        for b2 in range(bs):
            g = b1 * bs + b2
            lhs = x_ref[0, g].astype(compute_dtype).reshape(cc * th, w)
            part = jnp.dot(lhs, gmat_ref[b2],
                           preferred_element_type=jnp.float32)
            acc = part if acc is None else acc + part
        # Row-phase b1 owns the contiguous lanes [b1*bs*W, (b1+1)*bs*W).
        o_ref[0, :, :, b1 * chunk:(b1 + 1) * chunk] = (
            acc.reshape(cc, th, chunk).astype(o_ref.dtype))


def depth_to_space(x: jax.Array, block_size: int, *,
                   max_block_bytes: int = 4 << 20) -> jax.Array:
    """Pallas TPU implementation of DepthToSpace.forward (NCHW, DCR order)."""
    bs = int(block_size)
    n, c, h, w = x.shape
    if c % (bs * bs) != 0:
        raise ValueError("C must be divisible by block_size**2")
    c_out = c // (bs * bs)
    k_out = bs * bs * w
    itemsize = jnp.dtype(x.dtype).itemsize

    # MXU compute dtype.  bf16/f32 stay in their own dtype; the exact 0/1
    # weights mean each output element is a single nonzero product.
    # TODO(synk): integer inputs ride the f32 path and are exact only for
    #   |x| < 2**24 (no integer MXU mode); a layout-only path would lift that.
    if x.dtype == jnp.bfloat16 or x.dtype == jnp.float32:
        compute_dtype = x.dtype
    else:
        compute_dtype = jnp.float32

    # Sublane quantum for the input dtype (8 f32 / 16 bf16 / 32 int8).
    sub = 8 * max(1, 4 // itemsize)

    # ---- tile selection: largest blocks under the budget; cdiv grid, so no
    # divisibility requirement (Pallas masks the ragged tail blocks). --------
    row_bytes = bs * bs * w * itemsize            # one h-row, one out-channel
    th_cap = max(1, max_block_bytes // row_bytes)
    th = h if th_cap >= h else min(h, max(sub, (th_cap // sub) * sub))
    blk_bytes = bs * bs * th * w * itemsize
    cc = int(min(c_out, max(1, max_block_bytes // max(1, blk_bytes))))
    if cc > 1 and th % sub != 0:
        cc = 1   # keep the in-kernel (cc, th, w) -> (cc*th, w) merge aligned

    # v7x has 2 TensorCores: make sure the parallel grid has >= 2 steps.
    if n * pl.cdiv(c_out, cc) * pl.cdiv(h, th) < 2:
        if c_out > 1:
            cc = (c_out + 1) // 2
        elif h >= 2 * sub:
            th = max(sub, ((h // 2) // sub) * sub)

    grid = (n, pl.cdiv(c_out, cc), pl.cdiv(h, th))

    # Host-built 0/1 scatter matrices G[b2, w, w*bs + b2] = 1, DMA'd once
    # (constant index_map) and resident across the whole grid.
    gm = np.zeros((bs, w, bs * w), dtype=np.float32)
    for b2 in range(bs):
        gm[b2, np.arange(w), np.arange(w) * bs + b2] = 1.0
    gmats = jnp.asarray(gm, dtype=compute_dtype)

    # VMEM limit derived from the actual buffers: 2x double-buffered input +
    # output blocks, 2x the resident scatter matrices, f32 dot intermediates,
    # plus headroom; capped at 48 MiB so it stays v7x-safe (64 MiB physical).
    cds = jnp.dtype(compute_dtype).itemsize
    in_blk = bs * bs * cc * th * w * itemsize
    out_blk = cc * th * k_out * itemsize
    gmat_b = bs * w * bs * w * cds
    inter = cc * th * bs * w * 4
    vmem_limit = 2 * (in_blk + out_blk) + 2 * gmat_b + 4 * inter + (8 << 20)
    vmem_limit = int(min(max(vmem_limit, 16 << 20), 48 << 20))

    # Pure reshape only in the wrapper (no data movement outside the kernel).
    x6 = x.reshape(n, bs * bs, c_out, h, w)       # channel index = g*c_out + co

    kernel = functools.partial(_d2s_kernel, bs=bs, cc=cc, th=th, w=w,
                               compute_dtype=compute_dtype)

    out_view = pl.pallas_call(
        kernel,
        out_shape=jax.ShapeDtypeStruct((n, c_out, h, k_out), x.dtype),
        grid=grid,
        in_specs=[
            # Resident constants: same block every step -> DMA'd once.
            pl.BlockSpec((bs, w, bs * w), lambda i, j, t: (0, 0, 0)),
            pl.BlockSpec((1, bs * bs, cc, th, w),
                         lambda i, j, t: (i, 0, j, t, 0)),
        ],
        out_specs=pl.BlockSpec((1, cc, th, k_out),
                               lambda i, j, t: (i, j, t, 0)),
        compiler_params=pltpu.CompilerParams(
            dimension_semantics=("parallel", "parallel", "parallel"),
            vmem_limit_bytes=vmem_limit),
    )(gmats, x6)

    # (n, c_out, H, bs*bs*W) -> (n, c_out, H*bs, W*bs): contiguous reshape.
    return out_view.reshape(n, c_out, h * bs, w * bs)


def depth_to_space_ref(x: jax.Array, block_size: int) -> jax.Array:
    """Pure-JAX reference, mirrors the PyTorch view/permute/view exactly."""
    bs = block_size
    n, c, h, w = x.shape
    c_out = c // (bs * bs)
    y = x.reshape(n, bs, bs, c_out, h, w)
    y = jnp.transpose(y, (0, 3, 4, 1, 5, 2))
    return y.reshape(n, c_out, h * bs, w * bs)


if __name__ == "__main__":
    key = jax.random.PRNGKey(0)
    block_size = 2

    # f32 path: strict check against the pure-JAX reference.
    n, c, h, w = 2, 8, 16, 64          # c_out = 2 -> output (2, 2, 32, 128)
    x = jax.random.normal(key, (n, c, h, w), dtype=jnp.float32)
    out = jax.block_until_ready(depth_to_space(x, block_size))
    ref = depth_to_space_ref(x, block_size)
    assert out.shape == ref.shape, (out.shape, ref.shape)
    assert jnp.allclose(out, ref, atol=1e-6, rtol=1e-6), "f32 mismatch vs reference"

    # bf16 path: fast bf16 MXU; 0/1 weights keep the scatter exact.
    xb = x.astype(jnp.bfloat16)
    outb = jax.block_until_ready(depth_to_space(xb, block_size))
    refb = depth_to_space_ref(xb, block_size)
    assert jnp.allclose(outb.astype(jnp.float32), refb.astype(jnp.float32),
                        atol=1e-2, rtol=1e-2), "bf16 mismatch vs reference"

    print("KERNEL_OK")
</pallas_src>

<mosaic_0001>
module attributes {stable_mosaic.version = 11 : i64} {
  func.func @_d2s_kernel(%arg0: i32, %arg1: i32, %arg2: i32, %arg3: memref<2x64x128xf32, #tpu.memory_space<vmem>>, %arg4: memref<1x4x2x16x64xf32, #tpu.memory_space<vmem>>, %arg5: memref<1x2x16x256xf32, #tpu.memory_space<vmem>>) attributes {dimension_semantics = [#tpu.dimension_semantics<parallel>, #tpu.dimension_semantics<parallel>, #tpu.dimension_semantics<parallel>], iteration_bounds = array<i64: 2, 1, 1>, scalar_prefetch = 0 : i64, scratch_operands = 0 : i64, tpu.core_type = #tpu.core_type<tc>, window_params = [{pipeline_mode = #tpu.pipeline_mode<synchronous>, transform_indices = @transform_0, window_bounds = array<i64: 2, 64, 128>}, {transform_indices = @transform_1, window_bounds = array<i64: 1, 4, 2, 16, 64>}, {transform_indices = @transform_2, window_bounds = array<i64: 1, 2, 16, 256>}]} {
    %c0 = arith.constant 0 : index
    %c0_0 = arith.constant 0 : index
    %c0_1 = arith.constant 0 : index
    %c0_2 = arith.constant 0 : index
    %c0_3 = arith.constant 0 : index
    %0 = vector.load %arg4[%c0, %c0_0, %c0_1, %c0_2, %c0_3] : memref<1x4x2x16x64xf32, #tpu.memory_space<vmem>>, vector<1x1x2x16x64xf32>
    %1 = vector.shape_cast %0 : vector<1x1x2x16x64xf32> to vector<2x16x64xf32>
    %2 = vector.shape_cast %1 : vector<2x16x64xf32> to vector<32x64xf32>
    %c0_4 = arith.constant 0 : index
    %c0_5 = arith.constant 0 : index
    %c0_6 = arith.constant 0 : index
    %3 = vector.load %arg3[%c0_4, %c0_5, %c0_6] : memref<2x64x128xf32, #tpu.memory_space<vmem>>, vector<1x64x128xf32>
    %4 = vector.shape_cast %3 : vector<1x64x128xf32> to vector<64x128xf32>
    %cst = arith.constant dense<0.000000e+00> : vector<32x128xf32>
    %5 = tpu.matmul %2, %4, %cst {dimension_numbers = #tpu.dot_dimension_numbers<[1], [0], [0], [1], [0, 0, 1, 1], [], []>} : vector<32x64xf32>, vector<64x128xf32>, vector<32x128xf32> -> vector<32x128xf32>
    %c0_7 = arith.constant 0 : index
    %c1 = arith.constant 1 : index
    %c0_8 = arith.constant 0 : index
    %c0_9 = arith.constant 0 : index
    %c0_10 = arith.constant 0 : index
    %6 = vector.load %arg4[%c0_7, %c1, %c0_8, %c0_9, %c0_10] : memref<1x4x2x16x64xf32, #tpu.memory_space<vmem>>, vector<1x1x2x16x64xf32>
    %7 = vector.shape_cast %6 : vector<1x1x2x16x64xf32> to vector<2x16x64xf32>
    %8 = vector.shape_cast %7 : vector<2x16x64xf32> to vector<32x64xf32>
    %c1_11 = arith.constant 1 : index
    %c0_12 = arith.constant 0 : index
    %c0_13 = arith.constant 0 : index
    %9 = vector.load %arg3[%c1_11, %c0_12, %c0_13] : memref<2x64x128xf32, #tpu.memory_space<vmem>>, vector<1x64x128xf32>
    %10 = vector.shape_cast %9 : vector<1x64x128xf32> to vector<64x128xf32>
    %cst_14 = arith.constant dense<0.000000e+00> : vector<32x128xf32>
    %11 = tpu.matmul %8, %10, %cst_14 {dimension_numbers = #tpu.dot_dimension_numbers<[1], [0], [0], [1], [0, 0, 1, 1], [], []>} : vector<32x64xf32>, vector<64x128xf32>, vector<32x128xf32> -> vector<32x128xf32>
    %12 = arith.addf %5, %11 : vector<32x128xf32>
    %13 = vector.shape_cast %12 : vector<32x128xf32> to vector<2x16x128xf32>
    %c0_15 = arith.constant 0 : index
    %c0_16 = arith.constant 0 : index
    %c0_17 = arith.constant 0 : index
    %c0_18 = arith.constant 0 : index
    %14 = vector.load %arg5[%c0_15, %c0_16, %c0_17, %c0_18] : memref<1x2x16x256xf32, #tpu.memory_space<vmem>>, vector<1x2x16x128xf32>
    %15 = vector.shape_cast %14 : vector<1x2x16x128xf32> to vector<2x16x128xf32>
    %16 = vector.shape_cast %13 : vector<2x16x128xf32> to vector<1x2x16x128xf32>
    tpu.vector_store %arg5[%c0_15, %c0_16, %c0_17, %c0_18], %16 {strides = array<i32>} : memref<1x2x16x256xf32, #tpu.memory_space<vmem>>, vector<1x2x16x128xf32>,
    %c0_19 = arith.constant 0 : index
    %c2 = arith.constant 2 : index
    %c0_20 = arith.constant 0 : index
    %c0_21 = arith.constant 0 : index
    %c0_22 = arith.constant 0 : index
    %17 = vector.load %arg4[%c0_19, %c2, %c0_20, %c0_21, %c0_22] : memref<1x4x2x16x64xf32, #tpu.memory_space<vmem>>, vector<1x1x2x16x64xf32>
    %18 = vector.shape_cast %17 : vector<1x1x2x16x64xf32> to vector<2x16x64xf32>
    %19 = vector.shape_cast %18 : vector<2x16x64xf32> to vector<32x64xf32>
    %c0_23 = arith.constant 0 : index
    %c0_24 = arith.constant 0 : index
    %c0_25 = arith.constant 0 : index
    %20 = vector.load %arg3[%c0_23, %c0_24, %c0_25] : memref<2x64x128xf32, #tpu.memory_space<vmem>>, vector<1x64x128xf32>
    %21 = vector.shape_cast %20 : vector<1x64x128xf32> to vector<64x128xf32>
    %cst_26 = arith.constant dense<0.000000e+00> : vector<32x128xf32>
    %22 = tpu.matmul %19, %21, %cst_26 {dimension_numbers = #tpu.dot_dimension_numbers<[1], [0], [0], [1], [0, 0, 1, 1], [], []>} : vector<32x64xf32>, vector<64x128xf32>, vector<32x128xf32> -> vector<32x128xf32>
    %c0_27 = arith.constant 0 : index
    %c3 = arith.constant 3 : index
    %c0_28 = arith.constant 0 : index
    %c0_29 = arith.constant 0 : index
    %c0_30 = arith.constant 0 : index
    %23 = vector.load %arg4[%c0_27, %c3, %c0_28, %c0_29, %c0_30] : memref<1x4x2x16x64xf32, #tpu.memory_space<vmem>>, vector<1x1x2x16x64xf32>
    %24 = vector.shape_cast %23 : vector<1x1x2x16x64xf32> to vector<2x16x64xf32>
    %25 = vector.shape_cast %24 : vector<2x16x64xf32> to vector<32x64xf32>
    %c1_31 = arith.constant 1 : index
    %c0_32 = arith.constant 0 : index
    %c0_33 = arith.constant 0 : index
    %26 = vector.load %arg3[%c1_31, %c0_32, %c0_33] : memref<2x64x128xf32, #tpu.memory_space<vmem>>, vector<1x64x128xf32>
    %27 = vector.shape_cast %26 : vector<1x64x128xf32> to vector<64x128xf32>
    %cst_34 = arith.constant dense<0.000000e+00> : vector<32x128xf32>
    %28 = tpu.matmul %25, %27, %cst_34 {dimension_numbers = #tpu.dot_dimension_numbers<[1], [0], [0], [1], [0, 0, 1, 1], [], []>} : vector<32x64xf32>, vector<64x128xf32>, vector<32x128xf32> -> vector<32x128xf32>
    %29 = arith.addf %22, %28 : vector<32x128xf32>
    %30 = vector.shape_cast %29 : vector<32x128xf32> to vector<2x16x128xf32>
    %c0_35 = arith.constant 0 : index
    %c0_36 = arith.constant 0 : index
    %c0_37 = arith.constant 0 : index
    %c128 = arith.constant 128 : index
    %31 = vector.load %arg5[%c0_35, %c0_36, %c0_37, %c128] : memref<1x2x16x256xf32, #tpu.memory_space<vmem>>, vector<1x2x16x128xf32>
    %32 = vector.shape_cast %31 : vector<1x2x16x128xf32> to vector<2x16x128xf32>
    %33 = vector.shape_cast %30 : vector<2x16x128xf32> to vector<1x2x16x128xf32>
    tpu.vector_store %arg5[%c0_35, %c0_36, %c0_37, %c128], %33 {strides = array<i32>} : memref<1x2x16x256xf32, #tpu.memory_space<vmem>>, vector<1x2x16x128xf32>,
    return
  }
  func.func @transform_0(%arg0: i32, %arg1: i32, %arg2: i32) -> (i32, i32, i32) {
    %c0_i32 = arith.constant 0 : i32
    %c0_i32_0 = arith.constant 0 : i32
    %c0_i32_1 = arith.constant 0 : i32
    %c0_i32_2 = arith.constant 0 : i32
    return %c0_i32, %c0_i32_0, %c0_i32_1 : i32, i32, i32
  }
  func.func @transform_1(%arg0: i32, %arg1: i32, %arg2: i32) -> (i32, i32, i32, i32, i32) {
    %c0_i32 = arith.constant 0 : i32
    %c0_i32_0 = arith.constant 0 : i32
    %c0_i32_1 = arith.constant 0 : i32
    return %arg0, %c0_i32, %arg1, %arg2, %c0_i32_0 : i32, i32, i32, i32, i32
  }
  func.func @transform_2(%arg0: i32, %arg1: i32, %arg2: i32) -> (i32, i32, i32, i32) {
    %c0_i32 = arith.constant 0 : i32
    %c0_i32_0 = arith.constant 0 : i32
    return %arg0, %arg1, %arg2, %c0_i32 : i32, i32, i32, i32
  }
}

</mosaic_0001>

<llo_original>
// kernel: tpu_custom_call.1
$region0: #{tpu_custom_call.1}
  #allocation0 [shape = 'u32[]', space=smem, size = 0x4, offset = 0x4, fixed_abs, tag = 'smem constant byte address 0x4 - core index']
  #allocation1 [shape = 'u32[144,128]{1,0:T(1,128)}', space=vmem, size = 0x12000, scoped, tag = 'internal scratch']
  %s0 = inlined_call_operand.hbm [shape: f32[2,64,128], index: 0, kind: input, shape index: {}]
  %s1 = inlined_call_operand.hbm [shape: f32[2,4,2,16,64], index: 1, kind: input, shape index: {}]
  %s2 = inlined_call_operand.hbm [shape: f32[2,2,16,256], index: 2, kind: output, shape index: {}]
  %s3 = sld [smem:[#allocation0]]
  $region49: #{tpu_custom_call.1} parent=0
    _
  %s5 = ssub.s32 1, %s3
  %s6 = scalar_select 0, %s5, %s3
  $region1: #{tpu_custom_call.1} parent=0
    #allocation2 [shape = 'u8[65536]{0}', space=vmem, size = 0x10000, scoped, tag = 'input window, operand 0, single buffered']
    #allocation3 [shape = 's32[2]{0}', space=sflag, size = 0x8, scoped, tag = 'scoped memory for tpu_custom_call.1']
    #allocation4 [shape = 's32[2]{0}', space=sflag, size = 0x8, scoped, tag = 'scoped memory for tpu_custom_call.1']
    #allocation5 [shape = 'u8[131072]{0}', space=vmem, size = 0x20000, scoped, tag = 'input window, operand 1']
    #allocation6 [shape = 's32[2]{0}', space=sflag, size = 0x8, scoped, tag = 'scoped memory for tpu_custom_call.1']
    #allocation7 [shape = 'u8[65536]{0}', space=vmem, size = 0x10000, scoped, tag = 'output window, operand 0']
    %7 = vsyncpa [#allocation3], 0
    %8 = vsyncpa [#allocation6], 0
    %s9 = scalar_lea.sflag [#allocation6], 1
    %10 = vsyncpa %s9, 0
    %11 = vsyncpa [#allocation4], 0
    %s12 = scalar_lea.sflag [#allocation4], 1
    %13 = vsyncpa %s12, 0
    loop: start=0, step=1, limit=4
    $region2: #{tpu_custom_call.1} parent=1 // loop_pre_header
      _
    $region3: #{tpu_custom_call.1} parent=1 // loop_header
      %s15 = sphi 0, %s19
      %p16 = scmp.ge.s32.totalorder %s15, 4
      %s22 = sphi 0, %s41
      %s23 = sphi 0, %s37
      %s24 = sphi 0, %s33
      %s25 = sphi 0, %s22
      %s26 = sphi 0, %s23
      %s27 = sphi 0, %s24
      %s28 = sphi 0, %s25
      %s29 = sphi 0, %s26
      %s30 = sphi 0, %s27
      %s42 = sphi 0, %s42
      %s44 = sphi 0, %s42
      %s45 = sphi 0, %s44
      %s59 = sphi 0, %s45
      %s69 = sphi 0, %s71
      %s72 = sphi 0, %s69
      %s73 = sphi 0, %s72
      %s89 = sphi 0, %s73
      %s99 = sphi 0, %s101
      %s102 = sphi 0, %s99
      %s103 = sphi 0, %s102
      %s119 = sphi 0, %s103
    $region4: #{tpu_custom_call.1} parent=1 // loop_header_branch
      %18 = sbr.rel (%p16) target = $region8
    $region5: #{tpu_custom_call.1} parent=1 // loop_body
      %s20 = ssub.s32 %s15, 1
      %s21 = ssub.s32 %s15, 2
      %s31 = sadd.s32 1, %s24
      %p32 = scmp.ge.s32.totalorder %s31, 1
      %s33 = scalar_select %p32, 0, %s31
      %s34 = sadd.s32 1, %s23
      %s35 = scalar_select %p32, %s34, %s23
      %p36 = scmp.ge.s32.totalorder %s35, 1
      %s37 = scalar_select %p36, 0, %s35
      %s38 = sadd.s32 1, %s22
      %s39 = scalar_select %p36, %s38, %s22
      %p40 = scmp.ge.s32.totalorder %s39, 2
      %s41 = scalar_select %p40, 0, %s39
      %s43 = sadd.s32 %s42, 1
      %p46 = scmp.eq.s32.totalorder %s15, 1
      %p47 = scmp.ne.s32.totalorder %s42, %s44
      %p48 = scmp.eq.s32.totalorder %s15, 0
      %p49 = por %p47, %p48
      %p50 = scmp.ne.s32.totalorder %s42, %s44
      %p51 = scmp.eq.s32.totalorder %s20, 1
      %p52 = por %p50, %p51
      %p53 = scmp.ne.s32.totalorder %s44, %s45
      %p54 = scmp.eq.s32.totalorder %s20, 0
      %p55 = por %p53, %p54
      %p56 = scmp.ne.s32.totalorder %s44, %s45
      %p57 = scmp.eq.s32.totalorder %s21, 1
      %p58 = por %p56, %p57
      %p60 = scmp.ne.s32.totalorder %s45, %s59
      %p61 = scmp.eq.s32.totalorder %s21, 0
      %p62 = por %p60, %p61
      %s63 = ssub.s32 %s22, %s41
      %s64 = ssub.s32 %s23, %s37
      %s65 = sor.u32 %s63, %s64
      %s66 = ssub.s32 %s24, %s33
      %s67 = sor.u32 %s65, %s66
      %p68 = scmp.eq.s32.totalorder %s67, 0
      %s70 = sadd.s32 %s69, 1
      %s71 = scalar_select %p68, %s69, %s70
      %p74 = pneg %p68
      %p75 = scmp.eq.s32.totalorder %s15, 1
      %p76 = por %p74, %p75
      %p77 = scmp.ne.s32.totalorder %s69, %s72
      %p78 = scmp.eq.s32.totalorder %s15, 0
      %p79 = por %p77, %p78
      %p80 = scmp.ne.s32.totalorder %s69, %s72
      %p81 = scmp.eq.s32.totalorder %s20, 1
      %p82 = por %p80, %p81
      %p83 = scmp.ne.s32.totalorder %s72, %s73
      %p84 = scmp.eq.s32.totalorder %s20, 0
      %p85 = por %p83, %p84
      %p86 = scmp.ne.s32.totalorder %s72, %s73
      %p87 = scmp.eq.s32.totalorder %s21, 1
      %p88 = por %p86, %p87
      %p90 = scmp.ne.s32.totalorder %s73, %s89
      %p91 = scmp.eq.s32.totalorder %s21, 0
      %p92 = por %p90, %p91
      %s93 = ssub.s32 %s22, %s41
      %s94 = ssub.s32 %s23, %s37
      %s95 = sor.u32 %s93, %s94
      %s96 = ssub.s32 %s24, %s33
      %s97 = sor.u32 %s95, %s96
      %p98 = scmp.eq.s32.totalorder %s97, 0
      %s100 = sadd.s32 %s99, 1
      %s101 = scalar_select %p98, %s99, %s100
      %p104 = pneg %p98
      %p105 = scmp.eq.s32.totalorder %s15, 1
      %p106 = por %p104, %p105
      %p107 = scmp.ne.s32.totalorder %s99, %s102
      %p108 = scmp.eq.s32.totalorder %s15, 0
      %p109 = por %p107, %p108
      %p110 = scmp.ne.s32.totalorder %s99, %s102
      %p111 = scmp.eq.s32.totalorder %s20, 1
      %p112 = por %p110, %p111
      %p113 = scmp.ne.s32.totalorder %s102, %s103
      %p114 = scmp.eq.s32.totalorder %s20, 0
      %p115 = por %p113, %p114
      %p116 = scmp.ne.s32.totalorder %s102, %s103
      %p117 = scmp.eq.s32.totalorder %s21, 1
      %p118 = por %p116, %p117
      %p120 = scmp.ne.s32.totalorder %s103, %s119
      %p121 = scmp.eq.s32.totalorder %s21, 0
      %p122 = por %p120, %p121
      %p123 = scmp.le.s32.totalorder 1, %s15
      %p124 = scmp.lt.s32.totalorder %s15, 3
      %p125 = pnand %p123, %p124
      %p126 = pneg %p125
      // Predicated region
      $region9: #{tpu_custom_call.1} parent=5 // pred_check
        _
      $region10: #{tpu_custom_call.1} parent=5 // pred_check_branch
        %128 = sbr.rel (%p125) target = $region12
      $region11: #{tpu_custom_call.1} parent=5 // pred_region
        %s129 = ssub.s32 %s15, 1
        // Predicated region
        $region13: #{tpu_custom_call.1} parent=11 // pred_check
          %p130 = pneg %p55
        $region14: #{tpu_custom_call.1} parent=11 // pred_check_branch
          %132 = sbr.rel (%p130) target = $region16
        $region15: #{tpu_custom_call.1} parent=11 // pred_region
          %s134 = ssub.s32 2048, 2048
          %135 = vsyncadd [#allocation3], %s134
          %s136 = sshll.u32 [#allocation2], 4
          %s137 = int_to_ptr.vmem [resolvable:$true] %s136
          %142 = dma.hbm_to_vmem [thread:$0]  %s0, 2048, %s137, [#allocation3], 128, 128, 8
        $region16: #{tpu_custom_call.1} parent=11 // pred_fallthru
          _
      $region12: #{tpu_custom_call.1} parent=5 // pred_fallthru
        _
      %p143 = scmp.lt.s32.totalorder %s15, 2
      // Predicated region
      $region17: #{tpu_custom_call.1} parent=5 // pred_check
        %p144 = pneg %p143
      $region18: #{tpu_custom_call.1} parent=5 // pred_check_branch
        %146 = sbr.rel (%p144) target = $region20
      $region19: #{tpu_custom_call.1} parent=5 // pred_region
        // Predicated region
        $region21: #{tpu_custom_call.1} parent=19 // pred_check
          %p147 = pneg %p79
        $region22: #{tpu_custom_call.1} parent=19 // pred_check_branch
          %149 = sbr.rel (%p147) target = $region24
        $region23: #{tpu_custom_call.1} parent=19 // pred_region
          %s150 = sand.u32 %s69, 1
          %s151 = scalar_lea.sflag [#allocation6], %s150
          %s152 = sand.u32 %s69, 1
          %s153 = smul.addr %s152, 128
          %s154 = scalar_lea.vmem [#allocation5], %s153
          %s155 = smul.u32 2, %s23
          %s156 = smul.u32 2, %s24
          %s158 = ssub.s32 2048, 2048
          %159 = vsyncadd %s151, %s158
          %s160 = smul.addr %s155, 2
          %s161 = sadd.s32 %s156, %s160
          %s162 = smul.addr %s22, 16
          %s163 = sadd.s32 %s161, %s162
          %s164 = smul.addr %s163, 128
          %s165 = scalar_lea.hbm %s1, %s164
          %s166 = sshll.u32 %s154, 4
          %s167 = int_to_ptr.vmem [resolvable:$true] %s166
          %172 = dma.hbm_to_vmem [thread:$0]  %s165, 2048, %s167, %s151, 128, 128, 8
        $region24: #{tpu_custom_call.1} parent=19 // pred_fallthru
          _
      $region20: #{tpu_custom_call.1} parent=5 // pred_fallthru
        _
      %p173 = scmp.le.s32.totalorder 1, %s15
      %p174 = scmp.lt.s32.totalorder %s15, 3
      %p175 = pnand %p173, %p174
      %p176 = pneg %p175
      // Predicated region
      $region25: #{tpu_custom_call.1} parent=5 // pred_check
        _
      $region26: #{tpu_custom_call.1} parent=5 // pred_check_branch
        %178 = sbr.rel (%p175) target = $region28
      $region27: #{tpu_custom_call.1} parent=5 // pred_region
        %s179 = ssub.s32 %s15, 1
        // Predicated region
        $region29: #{tpu_custom_call.1} parent=27 // pred_check
          %p180 = pneg %p55
        $region30: #{tpu_custom_call.1} parent=27 // pred_check_branch
          %182 = sbr.rel (%p180) target = $region32
        $region31: #{tpu_custom_call.1} parent=27 // pred_region
          %183 = dma.done [#allocation3], 2048
        $region32: #{tpu_custom_call.1} parent=27 // pred_fallthru
          _
        %s184 = sand.u32 %s72, 1
        %s185 = scalar_lea.sflag [#allocation6], %s184
        %s186 = sand.u32 %s72, 1
        %s187 = smul.addr %s186, 128
        %s188 = scalar_lea.vmem [#allocation5], %s187
        // Predicated region
        $region33: #{tpu_custom_call.1} parent=27 // pred_check
          %p189 = pneg %p85
        $region34: #{tpu_custom_call.1} parent=27 // pred_check_branch
          %191 = sbr.rel (%p189) target = $region36
        $region35: #{tpu_custom_call.1} parent=27 // pred_region
          %192 = dma.done %s185, 2048
        $region36: #{tpu_custom_call.1} parent=27 // pred_fallthru
          _
        %p193 = pneg %p55
        %p194 = pneg %p52
        %s195 = sand.u32 %s72, 1
        %s196 = scalar_lea.sflag [#allocation6], %s195
        %s197 = sand.u32 %s72, 1
        %s198 = smul.addr %s197, 128
        %s199 = scalar_lea.vmem [#allocation5], %s198
        %p200 = pneg %p85
        %p201 = pneg %p82
        %p202 = pneg %p115
        %p203 = pneg %p112
        %s204 = sand.u32 %s102, 1
        %s205 = scalar_lea.sflag [#allocation4], %s204
        %s206 = sand.u32 %s102, 1
        %s207 = smul.addr %s206, 64
        %s208 = scalar_lea.vmem [#allocation7], %s207
        %s209 = smul.u32 2, %s26
        %s210 = smul.u32 2, %s27
        %s211 = smul.u32 2, %s26
        %s212 = smul.u32 2, %s27
        %v213 = vld [vmem:[%s188] sm:$0xff]
        %v214 = vld [vmem:[%s188 + $0x8] sm:$0xff]
        %v215 = vld [vmem:[%s188 + $0x10] sm:$0xff]
        %v216 = vld [vmem:[%s188 + $0x18] sm:$0xff]
        %v217 = vld [vmem:[#allocation2] sm:$0xff]
        %v218 = vld [vmem:[#allocation2 + $0x8] sm:$0xff]
        %v219 = vld [vmem:[#allocation2 + $0x10] sm:$0xff]
        %v220 = vld [vmem:[#allocation2 + $0x18] sm:$0xff]
        %v221 = vld [vmem:[#allocation2 + $0x20] sm:$0xff]
        %v222 = vld [vmem:[#allocation2 + $0x28] sm:$0xff]
        %v223 = vld [vmem:[#allocation2 + $0x30] sm:$0xff]
        %v224 = vld [vmem:[#allocation2 + $0x38] sm:$0xff]
        %s225 = scalar_lea.vmem %s188, 32 [#allocation5]
        %v226 = vld [vmem:[%s225] sm:$0xff]
        %v227 = vld [vmem:[%s225 + $0x8] sm:$0xff]
        %v228 = vld [vmem:[%s225 + $0x10] sm:$0xff]
        %v229 = vld [vmem:[%s225 + $0x18] sm:$0xff]
        %s230 = scalar_lea.vmem [#allocation2], 64
        %v231 = vld [vmem:[%s230] sm:$0xff]
        %v232 = vld [vmem:[%s230 + $0x8] sm:$0xff]
        %v233 = vld [vmem:[%s230 + $0x10] sm:$0xff]
        %v234 = vld [vmem:[%s230 + $0x18] sm:$0xff]
        %v235 = vld [vmem:[%s230 + $0x20] sm:$0xff]
        %v236 = vld [vmem:[%s230 + $0x28] sm:$0xff]
        %v237 = vld [vmem:[%s230 + $0x30] sm:$0xff]
        %v238 = vld [vmem:[%s230 + $0x38] sm:$0xff]
        %vm239 = vcmask 523264
        %v241 = vsel %vm239, %v226, 0
        %v244 = vsel %vm239, %v227, 0
        %v247 = vsel %vm239, %v228, 0
        %v250 = vsel %vm239, %v229, 0
        %252 = vmatprep.subr.mxu0 0.0
        %253 = vmatpush1.msra.mxu0 %v231
        %254 = vmatprep.subr.mxu0 0.0
        %255 = vmatpush1.msra.mxu0 %v232
        %256 = vmatprep.subr.mxu0 0.0
        %257 = vmatpush1.msra.mxu0 %v233
        %258 = vmatprep.subr.mxu0 0.0
        %259 = vmatpush1.msra.mxu0 %v234
        %260 = vmatprep.subr.mxu0 0.0
        %261 = vmatpush1.msra.mxu0 %v235
        %262 = vmatprep.subr.mxu0 0.0
        %263 = vmatpush1.msra.mxu0 %v236
        %264 = vmatprep.subr.mxu0 0.0
        %265 = vmatpush1.msra.mxu0 %v237
        %266 = vmatprep.subr.mxu0 0.0
        %267 = vmatpush1.msra.mxu0 %v238
        %268 = vmatprep.subr.mxu0 0.0
        %269 = vmatpush1.msra.mxu0 0.0
        %270 = vmatprep.subr.mxu0 0.0
        %271 = vmatpush1.msra.mxu0 0.0
        %272 = vmatprep.subr.mxu0 0.0
        %273 = vmatpush1.msra.mxu0 0.0
        %274 = vmatprep.subr.mxu0 0.0
        %275 = vmatpush1.msra.mxu0 0.0
        %276 = vmatprep.subr.mxu0 0.0
        %277 = vmatpush1.msra.mxu0 0.0
        %278 = vmatprep.subr.mxu0 0.0
        %279 = vmatpush1.msra.mxu0 0.0
        %280 = vmatprep.subr.mxu0 0.0
        %281 = vmatpush1.msra.mxu0 0.0
        %282 = vmatprep.subr.mxu0 0.0
        %283 = vmatpush1.msra.mxu0 0.0
        %284 = vmatprep.subr.mxu0 0.0
        %285 = vmatpush1.msra.mxu0 0.0
        %286 = vmatprep.subr.mxu0 0.0
        %287 = vmatpush1.msra.mxu0 0.0
        %288 = vmatprep.subr.mxu0 0.0
        %289 = vmatpush1.msra.mxu0 0.0
        %290 = vmatprep.subr.mxu0 0.0
        %291 = vmatpush1.msra.mxu0 0.0
        %292 = vmatprep.subr.mxu0 0.0
        %293 = vmatpush1.msra.mxu0 0.0
        %294 = vmatprep.subr.mxu0 0.0
        %295 = vmatpush1.msra.mxu0 0.0
        %296 = vmatprep.subr.mxu0 0.0
        %297 = vmatpush1.msra.mxu0 0.0
        %298 = vmatprep.subr.mxu0 0.0
        %299 = vmatpush1.msra.mxu0 0.0
        %300 = vmatprep.subr.mxu0 0.0
        %301 = vmatpush1.msra.mxu0 0.0
        %302 = vmatprep.subr.mxu0 0.0
        %303 = vmatpush1.msra.mxu0 0.0
        %304 = vmatprep.subr.mxu0 0.0
        %305 = vmatpush1.msra.mxu0 0.0
        %306 = vmatprep.subr.mxu0 0.0
        %307 = vmatpush1.msra.mxu0 0.0
        %308 = vmatprep.subr.mxu0 0.0
        %309 = vmatpush1.msra.mxu0 0.0
        %310 = vmatprep.subr.mxu0 0.0
        %311 = vmatpush1.msra.mxu0 0.0
        %312 = vmatprep.subr.mxu0 0.0
        %313 = vmatpush1.msra.mxu0 0.0
        %314 = vmatprep.subr.mxu0 0.0
        %315 = vmatpush1.msra.mxu0 0.0
        %316 = vmatprep.mubr.f32.mxu0 0.0
        %317 = vmatmul.mubr.f32.gmra.mrb[0].mxu0 %v241
        %v318 = vpop.f32.mrb[0].mxu0
        %v319 = vadd.f32 0.0, %v318
        %v320 = vpop.f32.mrb[0].mxu0
        %321 = vmatprep.mubr.f32.mxu0 0.0
        %322 = vmatmul.mubr.f32.gmra.mrb[0].mxu0 %v244
        %v323 = vpop.f32.mrb[0].mxu0
        %v324 = vadd.f32 0.0, %v323
        %v325 = vpop.f32.mrb[0].mxu0
        %326 = vmatprep.mubr.f32.mxu0 0.0
        %327 = vmatmul.mubr.f32.gmra.mrb[0].mxu0 %v247
        %v328 = vpop.f32.mrb[0].mxu0
        %v329 = vadd.f32 0.0, %v328
        %v330 = vpop.f32.mrb[0].mxu0
        %331 = vmatprep.mubr.f32.mxu0 0.0
        %332 = vmatmul.mubr.f32.gmra.mrb[0].mxu0 %v250
        %v333 = vpop.f32.mrb[0].mxu0
        %v334 = vadd.f32 0.0, %v333
        %v335 = vpop.f32.mrb[0].mxu0
        %336 = vdwg.mxu0
        %v338 = vsel %vm239, %v213, 0
        %v341 = vsel %vm239, %v214, 0
        %v344 = vsel %vm239, %v215, 0
        %v347 = vsel %vm239, %v216, 0
        %349 = vmatprep.subr.mxu0 0.0
        %350 = vmatpush1.msra.mxu0 %v217
        %351 = vmatprep.subr.mxu0 0.0
        %352 = vmatpush1.msra.mxu0 %v218
        %353 = vmatprep.subr.mxu0 0.0
        %354 = vmatpush1.msra.mxu0 %v219
        %355 = vmatprep.subr.mxu0 0.0
        %356 = vmatpush1.msra.mxu0 %v220
        %357 = vmatprep.subr.mxu0 0.0
        %358 = vmatpush1.msra.mxu0 %v221
        %359 = vmatprep.subr.mxu0 0.0
        %360 = vmatpush1.msra.mxu0 %v222
        %361 = vmatprep.subr.mxu0 0.0
        %362 = vmatpush1.msra.mxu0 %v223
        %363 = vmatprep.subr.mxu0 0.0
        %364 = vmatpush1.msra.mxu0 %v224
        %365 = vmatprep.subr.mxu0 0.0
        %366 = vmatpush1.msra.mxu0 0.0
        %367 = vmatprep.subr.mxu0 0.0
        %368 = vmatpush1.msra.mxu0 0.0
        %369 = vmatprep.subr.mxu0 0.0
        %370 = vmatpush1.msra.mxu0 0.0
        %371 = vmatprep.subr.mxu0 0.0
        %372 = vmatpush1.msra.mxu0 0.0
        %373 = vmatprep.subr.mxu0 0.0
        %374 = vmatpush1.msra.mxu0 0.0
        %375 = vmatprep.subr.mxu0 0.0
        %376 = vmatpush1.msra.mxu0 0.0
        %377 = vmatprep.subr.mxu0 0.0
        %378 = vmatpush1.msra.mxu0 0.0
        %379 = vmatprep.subr.mxu0 0.0
        %380 = vmatpush1.msra.mxu0 0.0
        %381 = vmatprep.subr.mxu0 0.0
        %382 = vmatpush1.msra.mxu0 0.0
        %383 = vmatprep.subr.mxu0 0.0
        %384 = vmatpush1.msra.mxu0 0.0
        %385 = vmatprep.subr.mxu0 0.0
        %386 = vmatpush1.msra.mxu0 0.0
        %387 = vmatprep.subr.mxu0 0.0
        %388 = vmatpush1.msra.mxu0 0.0
        %389 = vmatprep.subr.mxu0 0.0
        %390 = vmatpush1.msra.mxu0 0.0
        %391 = vmatprep.subr.mxu0 0.0
        %392 = vmatpush1.msra.mxu0 0.0
        %393 = vmatprep.subr.mxu0 0.0
        %394 = vmatpush1.msra.mxu0 0.0
        %395 = vmatprep.subr.mxu0 0.0
        %396 = vmatpush1.msra.mxu0 0.0
        %397 = vmatprep.subr.mxu0 0.0
        %398 = vmatpush1.msra.mxu0 0.0
        %399 = vmatprep.subr.mxu0 0.0
        %400 = vmatpush1.msra.mxu0 0.0
        %401 = vmatprep.subr.mxu0 0.0
        %402 = vmatpush1.msra.mxu0 0.0
        %403 = vmatprep.subr.mxu0 0.0
        %404 = vmatpush1.msra.mxu0 0.0
        %405 = vmatprep.subr.mxu0 0.0
        %406 = vmatpush1.msra.mxu0 0.0
        %407 = vmatprep.subr.mxu0 0.0
        %408 = vmatpush1.msra.mxu0 0.0
        %409 = vmatprep.subr.mxu0 0.0
        %410 = vmatpush1.msra.mxu0 0.0
        %411 = vmatprep.subr.mxu0 0.0
        %412 = vmatpush1.msra.mxu0 0.0
        %413 = vmatprep.mubr.f32.mxu0 0.0
        %414 = vmatmul.mubr.f32.gmra.mrb[0].mxu0 %v338
        %v415 = vpop.f32.mrb[0].mxu0
        %v416 = vadd.f32 %v319, %v415
        %v417 = vpop.f32.mrb[0].mxu0
        %418 = vmatprep.mubr.f32.mxu0 0.0
        %419 = vmatmul.mubr.f32.gmra.mrb[0].mxu0 %v341
        %v420 = vpop.f32.mrb[0].mxu0
        %v421 = vadd.f32 %v324, %v420
        %v422 = vpop.f32.mrb[0].mxu0
        %423 = vmatprep.mubr.f32.mxu0 0.0
        %424 = vmatmul.mubr.f32.gmra.mrb[0].mxu0 %v344
        %v425 = vpop.f32.mrb[0].mxu0
        %v426 = vadd.f32 %v329, %v425
        %v427 = vpop.f32.mrb[0].mxu0
        %428 = vmatprep.mubr.f32.mxu0 0.0
        %429 = vmatmul.mubr.f32.gmra.mrb[0].mxu0 %v347
        %v430 = vpop.f32.mrb[0].mxu0
        %v431 = vadd.f32 %v334, %v430
        %v432 = vpop.f32.mrb[0].mxu0
        %433 = vdwg.mxu0
        %434 = vst [vmem:[%s208] sm:$0xff] %v416
        %435 = vst [vmem:[%s208 + $0x10] sm:$0xff] %v421
        %436 = vst [vmem:[%s208 + $0x20] sm:$0xff] %v426
        %437 = vst [vmem:[%s208 + $0x30] sm:$0xff] %v431
        %s438 = scalar_lea.vmem %s188, 64 [#allocation5]
        %v439 = vld [vmem:[%s438] sm:$0xff]
        %v440 = vld [vmem:[%s438 + $0x8] sm:$0xff]
        %v441 = vld [vmem:[%s438 + $0x10] sm:$0xff]
        %v442 = vld [vmem:[%s438 + $0x18] sm:$0xff]
        %v443 = vld [vmem:[#allocation2] sm:$0xff]
        %v444 = vld [vmem:[#allocation2 + $0x8] sm:$0xff]
        %v445 = vld [vmem:[#allocation2 + $0x10] sm:$0xff]
        %v446 = vld [vmem:[#allocation2 + $0x18] sm:$0xff]
        %v447 = vld [vmem:[#allocation2 + $0x20] sm:$0xff]
        %v448 = vld [vmem:[#allocation2 + $0x28] sm:$0xff]
        %v449 = vld [vmem:[#allocation2 + $0x30] sm:$0xff]
        %v450 = vld [vmem:[#allocation2 + $0x38] sm:$0xff]
        %s451 = scalar_lea.vmem %s188, 96 [#allocation5]
        %v452 = vld [vmem:[%s451] sm:$0xff]
        %v453 = vld [vmem:[%s451 + $0x8] sm:$0xff]
        %v454 = vld [vmem:[%s451 + $0x10] sm:$0xff]
        %v455 = vld [vmem:[%s451 + $0x18] sm:$0xff]
        %v456 = vld [vmem:[%s230] sm:$0xff]
        %v457 = vld [vmem:[%s230 + $0x8] sm:$0xff]
        %v458 = vld [vmem:[%s230 + $0x10] sm:$0xff]
        %v459 = vld [vmem:[%s230 + $0x18] sm:$0xff]
        %v460 = vld [vmem:[%s230 + $0x20] sm:$0xff]
        %v461 = vld [vmem:[%s230 + $0x28] sm:$0xff]
        %v462 = vld [vmem:[%s230 + $0x30] sm:$0xff]
        %v463 = vld [vmem:[%s230 + $0x38] sm:$0xff]
        %v465 = vsel %vm239, %v452, 0
        %v468 = vsel %vm239, %v453, 0
        %v471 = vsel %vm239, %v454, 0
        %v474 = vsel %vm239, %v455, 0
        %476 = vmatprep.subr.mxu0 0.0
        %477 = vmatpush1.msra.mxu0 %v456
        %478 = vmatprep.subr.mxu0 0.0
        %479 = vmatpush1.msra.mxu0 %v457
        %480 = vmatprep.subr.mxu0 0.0
        %481 = vmatpush1.msra.mxu0 %v458
        %482 = vmatprep.subr.mxu0 0.0
        %483 = vmatpush1.msra.mxu0 %v459
        %484 = vmatprep.subr.mxu0 0.0
        %485 = vmatpush1.msra.mxu0 %v460
        %486 = vmatprep.subr.mxu0 0.0
        %487 = vmatpush1.msra.mxu0 %v461
        %488 = vmatprep.subr.mxu0 0.0
        %489 = vmatpush1.msra.mxu0 %v462
        %490 = vmatprep.subr.mxu0 0.0
        %491 = vmatpush1.msra.mxu0 %v463
        %492 = vmatprep.subr.mxu0 0.0
        %493 = vmatpush1.msra.mxu0 0.0
        %494 = vmatprep.subr.mxu0 0.0
        %495 = vmatpush1.msra.mxu0 0.0
        %496 = vmatprep.subr.mxu0 0.0
        %497 = vmatpush1.msra.mxu0 0.0
        %498 = vmatprep.subr.mxu0 0.0
        %499 = vmatpush1.msra.mxu0 0.0
        %500 = vmatprep.subr.mxu0 0.0
        %501 = vmatpush1.msra.mxu0 0.0
        %502 = vmatprep.subr.mxu0 0.0
        %503 = vmatpush1.msra.mxu0 0.0
        %504 = vmatprep.subr.mxu0 0.0
        %505 = vmatpush1.msra.mxu0 0.0
        %506 = vmatprep.subr.mxu0 0.0
        %507 = vmatpush1.msra.mxu0 0.0
        %508 = vmatprep.subr.mxu0 0.0
        %509 = vmatpush1.msra.mxu0 0.0
        %510 = vmatprep.subr.mxu0 0.0
        %511 = vmatpush1.msra.mxu0 0.0
        %512 = vmatprep.subr.mxu0 0.0
        %513 = vmatpush1.msra.mxu0 0.0
        %514 = vmatprep.subr.mxu0 0.0
        %515 = vmatpush1.msra.mxu0 0.0
        %516 = vmatprep.subr.mxu0 0.0
        %517 = vmatpush1.msra.mxu0 0.0
        %518 = vmatprep.subr.mxu0 0.0
        %519 = vmatpush1.msra.mxu0 0.0
        %520 = vmatprep.subr.mxu0 0.0
        %521 = vmatpush1.msra.mxu0 0.0
        %522 = vmatprep.subr.mxu0 0.0
        %523 = vmatpush1.msra.mxu0 0.0
        %524 = vmatprep.subr.mxu0 0.0
        %525 = vmatpush1.msra.mxu0 0.0
        %526 = vmatprep.subr.mxu0 0.0
        %527 = vmatpush1.msra.mxu0 0.0
        %528 = vmatprep.subr.mxu0 0.0
        %529 = vmatpush1.msra.mxu0 0.0
        %530 = vmatprep.subr.mxu0 0.0
        %531 = vmatpush1.msra.mxu0 0.0
        %532 = vmatprep.subr.mxu0 0.0
        %533 = vmatpush1.msra.mxu0 0.0
        %534 = vmatprep.subr.mxu0 0.0
        %535 = vmatpush1.msra.mxu0 0.0
        %536 = vmatprep.subr.mxu0 0.0
        %537 = vmatpush1.msra.mxu0 0.0
        %538 = vmatprep.subr.mxu0 0.0
        %539 = vmatpush1.msra.mxu0 0.0
        %540 = vmatprep.mubr.f32.mxu0 0.0
        %541 = vmatmul.mubr.f32.gmra.mrb[0].mxu0 %v465
        %v542 = vpop.f32.mrb[0].mxu0
        %v543 = vadd.f32 0.0, %v542
        %v544 = vpop.f32.mrb[0].mxu0
        %545 = vmatprep.mubr.f32.mxu0 0.0
        %546 = vmatmul.mubr.f32.gmra.mrb[0].mxu0 %v468
        %v547 = vpop.f32.mrb[0].mxu0
        %v548 = vadd.f32 0.0, %v547
        %v549 = vpop.f32.mrb[0].mxu0
        %550 = vmatprep.mubr.f32.mxu0 0.0
        %551 = vmatmul.mubr.f32.gmra.mrb[0].mxu0 %v471
        %v552 = vpop.f32.mrb[0].mxu0
        %v553 = vadd.f32 0.0, %v552
        %v554 = vpop.f32.mrb[0].mxu0
        %555 = vmatprep.mubr.f32.mxu0 0.0
        %556 = vmatmul.mubr.f32.gmra.mrb[0].mxu0 %v474
        %v557 = vpop.f32.mrb[0].mxu0
        %v558 = vadd.f32 0.0, %v557
        %v559 = vpop.f32.mrb[0].mxu0
        %560 = vdwg.mxu0
        %v562 = vsel %vm239, %v439, 0
        %v565 = vsel %vm239, %v440, 0
        %v568 = vsel %vm239, %v441, 0
        %v571 = vsel %vm239, %v442, 0
        %573 = vmatprep.subr.mxu0 0.0
        %574 = vmatpush1.msra.mxu0 %v443
        %575 = vmatprep.subr.mxu0 0.0
        %576 = vmatpush1.msra.mxu0 %v444
        %577 = vmatprep.subr.mxu0 0.0
        %578 = vmatpush1.msra.mxu0 %v445
        %579 = vmatprep.subr.mxu0 0.0
        %580 = vmatpush1.msra.mxu0 %v446
        %581 = vmatprep.subr.mxu0 0.0
        %582 = vmatpush1.msra.mxu0 %v447
        %583 = vmatprep.subr.mxu0 0.0
        %584 = vmatpush1.msra.mxu0 %v448
        %585 = vmatprep.subr.mxu0 0.0
        %586 = vmatpush1.msra.mxu0 %v449
        %587 = vmatprep.subr.mxu0 0.0
        %588 = vmatpush1.msra.mxu0 %v450
        %589 = vmatprep.subr.mxu0 0.0
        %590 = vmatpush1.msra.mxu0 0.0
        %591 = vmatprep.subr.mxu0 0.0
        %592 = vmatpush1.msra.mxu0 0.0
        %593 = vmatprep.subr.mxu0 0.0
        %594 = vmatpush1.msra.mxu0 0.0
        %595 = vmatprep.subr.mxu0 0.0
        %596 = vmatpush1.msra.mxu0 0.0
        %597 = vmatprep.subr.mxu0 0.0
        %598 = vmatpush1.msra.mxu0 0.0
        %599 = vmatprep.subr.mxu0 0.0
        %600 = vmatpush1.msra.mxu0 0.0
        %601 = vmatprep.subr.mxu0 0.0
        %602 = vmatpush1.msra.mxu0 0.0
        %603 = vmatprep.subr.mxu0 0.0
        %604 = vmatpush1.msra.mxu0 0.0
        %605 = vmatprep.subr.mxu0 0.0
        %606 = vmatpush1.msra.mxu0 0.0
        %607 = vmatprep.subr.mxu0 0.0
        %608 = vmatpush1.msra.mxu0 0.0
        %609 = vmatprep.subr.mxu0 0.0
        %610 = vmatpush1.msra.mxu0 0.0
        %611 = vmatprep.subr.mxu0 0.0
        %612 = vmatpush1.msra.mxu0 0.0
        %613 = vmatprep.subr.mxu0 0.0
        %614 = vmatpush1.msra.mxu0 0.0
        %615 = vmatprep.subr.mxu0 0.0
        %616 = vmatpush1.msra.mxu0 0.0
        %617 = vmatprep.subr.mxu0 0.0
        %618 = vmatpush1.msra.mxu0 0.0
        %619 = vmatprep.subr.mxu0 0.0
        %620 = vmatpush1.msra.mxu0 0.0
        %621 = vmatprep.subr.mxu0 0.0
        %622 = vmatpush1.msra.mxu0 0.0
        %623 = vmatprep.subr.mxu0 0.0
        %624 = vmatpush1.msra.mxu0 0.0
        %625 = vmatprep.subr.mxu0 0.0
        %626 = vmatpush1.msra.mxu0 0.0
        %627 = vmatprep.subr.mxu0 0.0
        %628 = vmatpush1.msra.mxu0 0.0
        %629 = vmatprep.subr.mxu0 0.0
        %630 = vmatpush1.msra.mxu0 0.0
        %631 = vmatprep.subr.mxu0 0.0
        %632 = vmatpush1.msra.mxu0 0.0
        %633 = vmatprep.subr.mxu0 0.0
        %634 = vmatpush1.msra.mxu0 0.0
        %635 = vmatprep.subr.mxu0 0.0
        %636 = vmatpush1.msra.mxu0 0.0
        %637 = vmatprep.mubr.f32.mxu0 0.0
        %638 = vmatmul.mubr.f32.gmra.mrb[0].mxu0 %v562
        %v639 = vpop.f32.mrb[0].mxu0
        %v640 = vadd.f32 %v543, %v639
        %v641 = vpop.f32.mrb[0].mxu0
        %642 = vmatprep.mubr.f32.mxu0 0.0
        %643 = vmatmul.mubr.f32.gmra.mrb[0].mxu0 %v565
        %v644 = vpop.f32.mrb[0].mxu0
        %v645 = vadd.f32 %v548, %v644
        %v646 = vpop.f32.mrb[0].mxu0
        %647 = vmatprep.mubr.f32.mxu0 0.0
        %648 = vmatmul.mubr.f32.gmra.mrb[0].mxu0 %v568
        %v649 = vpop.f32.mrb[0].mxu0
        %v650 = vadd.f32 %v553, %v649
        %v651 = vpop.f32.mrb[0].mxu0
        %652 = vmatprep.mubr.f32.mxu0 0.0
        %653 = vmatmul.mubr.f32.gmra.mrb[0].mxu0 %v571
        %v654 = vpop.f32.mrb[0].mxu0
        %v655 = vadd.f32 %v558, %v654
        %v656 = vpop.f32.mrb[0].mxu0
        %657 = vdwg.mxu0
        %658 = vst [vmem:[%s208 + $0x8] sm:$0xff] %v640
        %659 = vst [vmem:[%s208 + $0x18] sm:$0xff] %v645
        %660 = vst [vmem:[%s208 + $0x28] sm:$0xff] %v650
        %661 = vst [vmem:[%s208 + $0x38] sm:$0xff] %v655
        %s662 = sand.u32 %s102, 1
        %s663 = scalar_lea.sflag [#allocation4], %s662
        %s664 = sand.u32 %s102, 1
        %s665 = smul.addr %s664, 64
        %s666 = scalar_lea.vmem [#allocation7], %s665
        // Predicated region
        $region37: #{tpu_custom_call.1} parent=27 // pred_check
          %p667 = pneg %p112
        $region38: #{tpu_custom_call.1} parent=27 // pred_check_branch
          %669 = sbr.rel (%p667) target = $region40
        $region39: #{tpu_custom_call.1} parent=27 // pred_region
          %s670 = smul.u32 2, %s26
          %s671 = smul.u32 2, %s27
          %s673 = ssub.s32 1024, 1024
          %674 = vsyncadd %s663, %s673
          %s675 = smul.addr %s671, 2
          %s676 = smul.addr %s670, 4
          %s677 = sadd.s32 %s675, %s676
          %s678 = smul.addr %s25, 8
          %s679 = sadd.s32 %s677, %s678
          %s680 = smul.addr %s679, 128
          %s681 = scalar_lea.hbm %s2, %s680
          %s682 = sshll.u32 %s666, 4
          %s683 = int_to_ptr.vmem [resolvable:$true] %s682
          %688 = dma.vmem_to_hbm [thread:$0]  %s683, 1024, %s681, %s663, 256, 256, 16
        $region40: #{tpu_custom_call.1} parent=27 // pred_fallthru
          _
      $region28: #{tpu_custom_call.1} parent=5 // pred_fallthru
        _
      %p689 = scmp.le.s32.totalorder 2, %s15
      // Predicated region
      $region41: #{tpu_custom_call.1} parent=5 // pred_check
        %p690 = pneg %p689
      $region42: #{tpu_custom_call.1} parent=5 // pred_check_branch
        %692 = sbr.rel (%p690) target = $region44
      $region43: #{tpu_custom_call.1} parent=5 // pred_region
        %s693 = ssub.s32 %s15, 2
        // Predicated region
        $region45: #{tpu_custom_call.1} parent=43 // pred_check
          %p694 = pneg %p118
        $region46: #{tpu_custom_call.1} parent=43 // pred_check_branch
          %696 = sbr.rel (%p694) target = $region48
        $region47: #{tpu_custom_call.1} parent=43 // pred_region
          %s697 = sand.u32 %s103, 1
          %s698 = scalar_lea.sflag [#allocation4], %s697
          %s699 = sand.u32 %s103, 1
          %s700 = smul.addr %s699, 64
          %s701 = scalar_lea.vmem [#allocation7], %s700
          %702 = dma.done %s698, 1024
        $region48: #{tpu_custom_call.1} parent=43 // pred_fallthru
          _
      $region44: #{tpu_custom_call.1} parent=5 // pred_fallthru
        _
    $region6: #{tpu_custom_call.1} parent=1 // loop_footer
      %s19 = sadd.s32 1, %s15
    $region7: #{tpu_custom_call.1} parent=1 // loop_footer_branch
      %14 = sbr.rel target = $region3
    $region8: #{tpu_custom_call.1} parent=1 // loop_exit
      _
    %703 = vsyncpa [#allocation3], 1
    %s704 = scalar_lea.sflag [#allocation3], 1
    %705 = vsyncpa %s704, 1
    %706 = vsyncpa [#allocation6], 1
    %s707 = scalar_lea.sflag [#allocation6], 1
    %708 = vsyncpa %s707, 1
    %709 = vsyncpa [#allocation4], 1
    %s710 = scalar_lea.sflag [#allocation4], 1
    %711 = vsyncpa %s710, 1

</llo_original>
